<compile_context>
chip_gen: v6e
topology: v6e:2x2x1
jax: 0.10.0
libtpu: 0.0.40
codegen_flags: <defaults>
</compile_context>

<pallas_src>
import math
import jax
import jax.numpy as jnp
from jax.experimental import pallas as pl
from jax.experimental.pallas import tpu as pltpu

EPS = 1e-5
VMEM_LIMIT = 32 * 1024 * 1024   # explicit scoped-VMEM budget, safe on v5e/v6e/v7x
# Row-tile cap for the conv matmul. 256 keeps the small test multi-tile; for
# production shapes raise toward 512-2048 (keep <=4096 on v7x's 64 MiB VMEM).
ROW_TILE_CAP = 256


# ---------------------------------------------------------------------------
# Pallas kernels
# ---------------------------------------------------------------------------
def conv_stats_kernel(p_ref, w_ref, y_ref, stats_ref):
    # Conv3d tile as MXU matmul: bf16 x bf16 inputs, f32 accumulation.
    acc = jnp.dot(p_ref[...], w_ref[...], preferred_element_type=jnp.float32)
    y_ref[...] = acc                                       # (TP, Cpad) f32
    # Per-tile partial BatchNorm statistics (per output channel).
    s1 = jnp.sum(acc, axis=0, keepdims=True)               # (1, Cpad)
    s2 = jnp.sum(acc * acc, axis=0, keepdims=True)         # (1, Cpad)
    stats_ref[0:1, 0:1, :] = s1[None]
    stats_ref[0:1, 1:2, :] = s2[None]


def bn_relu_pool_kernel(scale_ref, shift_ref, y_ref, o_ref, pad_ref):
    # One (n, d) spatial plane: fused BN affine + ReLU + dense 3x3 max.
    Ho, Wo = y_ref.shape[1], y_ref.shape[2]
    # Zero halo. Post-ReLU values are >= 0 and every pool window contains at
    # least one real element, so 0-padding is equivalent to -inf padding.
    pad_ref[...] = jnp.zeros_like(pad_ref)
    r = jnp.maximum(y_ref[0] * scale_ref[...] + shift_ref[...], 0.0)  # (Ho,Wo,C)
    pad_ref[pl.ds(1, Ho), pl.ds(1, Wo), :] = r
    s = pad_ref[...]                                       # (Ho+2, Wo+2, C)
    # 3-wide sliding max along H then W (contiguous slices only); the stride-2
    # decimation to (Hp, Wp) happens in the wrapper.
    hm = jnp.maximum(jnp.maximum(s[0:Ho], s[1:Ho + 1]), s[2:Ho + 2])
    o_ref[0] = jnp.maximum(jnp.maximum(hm[:, 0:Wo], hm[:, 1:Wo + 1]),
                           hm[:, 2:Wo + 2])                # (Ho, Wo, C)


# ---------------------------------------------------------------------------
# Glue (plain JAX): im2col patch extraction, tile picking, BN affine, final
# decimation + NCDHW transpose + flatten.
# ---------------------------------------------------------------------------
def im2col_3d(x, KD, KH, KW, sd, sh, sw, pd, ph, pw):
    N, C, D, H, W = x.shape
    Do = (D + 2 * pd - KD) // sd + 1
    Ho = (H + 2 * ph - KH) // sh + 1
    Wo = (W + 2 * pw - KW) // sw + 1
    xp = jnp.pad(x, ((0, 0), (0, 0), (pd, pd), (ph, ph), (pw, pw)))
    cols = []
    for c in range(C):                       # matches weight.reshape(Cout, -1)
        for kd in range(KD):
            for kh in range(KH):
                for kw in range(KW):
                    sl = xp[:, c,
                            kd: kd + sd * (Do - 1) + 1: sd,
                            kh: kh + sh * (Ho - 1) + 1: sh,
                            kw: kw + sw * (Wo - 1) + 1: sw]    # (N, Do, Ho, Wo)
                    cols.append(sl)
    patches = jnp.stack(cols, axis=-1)       # (N, Do, Ho, Wo, C*KD*KH*KW)
    return patches.reshape(N * Do * Ho * Wo, -1), (N, Do, Ho, Wo)


def _pick_tile(n, cap=ROW_TILE_CAP):
    cap = min(cap, n)
    cap -= cap % 8
    for t in range(cap, 7, -8):
        if n % t == 0:
            return t
    return n


def frontend3d_pallas(x, w, gamma, beta):
    N, Cin, D, H, W = x.shape
    Cout = w.shape[0]
    Cpad = 128                                   # lane-dense channel dim

    # ---- pass 1: Conv3d as tiled matmul + partial BN stats ------------------
    patches, (_, Do, Ho, Wo) = im2col_3d(x, 5, 7, 7, 1, 2, 2, 2, 3, 3)
    # TODO(synk): building patches per P-tile inside the kernel (manual DMA
    # over strided input windows) would avoid materializing the im2col matrix
    # in HBM; kept in XLA here.
    P, K = patches.shape
    Kpad = ((K + 127) // 128) * 128
    patches_b = jnp.pad(patches, ((0, 0), (0, Kpad - K))).astype(jnp.bfloat16)
    w_mat = jnp.pad(w.reshape(Cout, K).T,
                    ((0, Kpad - K), (0, Cpad - Cout))).astype(jnp.bfloat16)

    TP = _pick_tile(P)
    nP = P // TP

    y, stats = pl.pallas_call(
        conv_stats_kernel,
        out_shape=(jax.ShapeDtypeStruct((P, Cpad), jnp.float32),
                   jax.ShapeDtypeStruct((nP, 2, Cpad), jnp.float32)),
        grid=(nP,),
        in_specs=[pl.BlockSpec((TP, Kpad), lambda i: (i, 0)),
                  pl.BlockSpec((Kpad, Cpad), lambda i: (0, 0))],
        out_specs=(pl.BlockSpec((TP, Cpad), lambda i: (i, 0)),
                   pl.BlockSpec((1, 2, Cpad), lambda i: (i, 0, 0))),
        compiler_params=pltpu.CompilerParams(
            dimension_semantics=("parallel",),
            vmem_limit_bytes=VMEM_LIMIT),
    )(patches_b, w_mat)

    # ---- BatchNorm batch stats -> per-channel affine (tiny, plain JAX) ------
    mean = jnp.sum(stats[:, 0, :], axis=0) / float(P)
    var = jnp.maximum(jnp.sum(stats[:, 1, :], axis=0) / float(P) - mean * mean,
                      0.0)
    gamma_p = jnp.pad(gamma.astype(jnp.float32), (0, Cpad - Cout))
    beta_p = jnp.pad(beta.astype(jnp.float32), (0, Cpad - Cout))
    scale = gamma_p * jax.lax.rsqrt(var + EPS)   # pad channels: scale = 0
    shift = beta_p - mean * scale                # pad channels: shift = 0

    # ---- pass 2: fused BN + ReLU + MaxPool, tiled over (N*Do) planes --------
    planes = N * Do
    y4 = y.reshape(planes, Ho, Wo, Cpad)
    Hp = (Ho + 2 - 3) // 2 + 1
    Wp = (Wo + 2 - 3) // 2 + 1

    dense = pl.pallas_call(
        bn_relu_pool_kernel,
        out_shape=jax.ShapeDtypeStruct((planes, Ho, Wo, Cpad), jnp.float32),
        grid=(planes,),
        in_specs=[pl.BlockSpec((1, Cpad), lambda i: (0, 0)),
                  pl.BlockSpec((1, Cpad), lambda i: (0, 0)),
                  pl.BlockSpec((1, Ho, Wo, Cpad), lambda i: (i, 0, 0, 0))],
        out_specs=pl.BlockSpec((1, Ho, Wo, Cpad), lambda i: (i, 0, 0, 0)),
        scratch_shapes=[pltpu.VMEM((Ho + 2, Wo + 2, Cpad), jnp.float32)],
        compiler_params=pltpu.CompilerParams(
            dimension_semantics=("parallel",),
            vmem_limit_bytes=VMEM_LIMIT),
    )(scale.reshape(1, Cpad), shift.reshape(1, Cpad), y4)

    # stride-2 decimation, drop pad channels, back to NCDHW, then flatten()
    # (matches PyTorch's x.flatten() ordering exactly).
    pooled = dense.reshape(N, Do, Ho, Wo, Cpad)[
        :, :, 0:2 * Hp - 1:2, 0:2 * Wp - 1:2, :Cout]
    # TODO(synk): the BertTokenizer + EncoderDecoderModel('bert-base-uncased')
    # seq2seq head is a pretrained-checkpoint model with string tokenization;
    # it has no clean Pallas equivalent and is intentionally not faked here.
    return pooled.transpose(0, 4, 1, 2, 3).reshape(-1)


# Pure-JAX f32 reference for correctness checking.
def frontend3d_ref(x, w, gamma, beta):
    N, Cin, D, H, W = x.shape
    Cout = w.shape[0]
    patches, (_, Do, Ho, Wo) = im2col_3d(x, 5, 7, 7, 1, 2, 2, 2, 3, 3)
    K = patches.shape[1]
    acc = jnp.einsum("pk,ck->pc", patches, w.reshape(Cout, K),
                     precision=jax.lax.Precision.HIGHEST)
    mean = jnp.mean(acc, axis=0, keepdims=True)
    var = jnp.mean((acc - mean) ** 2, axis=0, keepdims=True)
    y = jnp.maximum(gamma * (acc - mean) * jax.lax.rsqrt(var + EPS) + beta, 0.0)
    y5 = y.reshape(N, Do, Ho, Wo, Cout)
    neg = jnp.finfo(jnp.float32).min
    yp = jnp.pad(y5, ((0, 0), (0, 0), (1, 1), (1, 1), (0, 0)),
                 constant_values=neg)
    Hp = (Ho + 2 - 3) // 2 + 1
    Wp = (Wo + 2 - 3) // 2 + 1
    cands = [yp[:, :, kh: kh + 2 * (Hp - 1) + 1: 2,
                kw: kw + 2 * (Wp - 1) + 1: 2, :]
             for kh in range(3) for kw in range(3)]
    pooled = jnp.max(jnp.stack(cands, axis=0), axis=0)       # (N,Do,Hp,Wp,C)
    return pooled.transpose(0, 4, 1, 2, 3).reshape(-1)


if __name__ == "__main__":
    key = jax.random.PRNGKey(0)
    kx, kw = jax.random.split(key)

    # Small shapes consistent with the module: NCDHW video input, Cin = 1.
    N, Cin, D, H, W = 2, 1, 4, 16, 16
    Cout = 64
    x = jax.random.normal(kx, (N, Cin, D, H, W), dtype=jnp.float32)

    # Deterministic PyTorch-style init: Conv3d kaiming-uniform bound
    # 1/sqrt(fan_in); BatchNorm3d weight=1, bias=0 (training mode -> batch
    # statistics, running stats unused).
    fan_in = Cin * 5 * 7 * 7
    bound = 1.0 / math.sqrt(fan_in)
    w = jax.random.uniform(kw, (Cout, Cin, 5, 7, 7),
                           minval=-bound, maxval=bound, dtype=jnp.float32)
    gamma = jnp.ones((Cout,), jnp.float32)
    beta = jnp.zeros((Cout,), jnp.float32)

    out = jax.block_until_ready(jax.jit(frontend3d_pallas)(x, w, gamma, beta))
    ref = jax.block_until_ready(frontend3d_ref(x, w, gamma, beta))

    assert out.shape == ref.shape == (N * Cout * D * 4 * 4,), out.shape
    assert bool(jnp.all(jnp.isfinite(out)))
    # bf16 MXU inputs (f32 accumulation) vs the f32 reference -> 2e-2 tolerance.
    max_err = float(jnp.max(jnp.abs(out - ref)))
    assert jnp.allclose(out, ref, rtol=2e-2, atol=2e-2), max_err

    print("KERNEL_OK")
</pallas_src>

<mosaic_0001>
module attributes {stable_mosaic.version = 11 : i64} {
  func.func @conv_stats_kernel(%arg0: i32, %arg1: memref<256x256xbf16, #tpu.memory_space<vmem>>, %arg2: memref<256x128xbf16, #tpu.memory_space<vmem>>, %arg3: memref<256x128xf32, #tpu.memory_space<vmem>>, %arg4: memref<1x2x128xf32, #tpu.memory_space<vmem>>) attributes {dimension_semantics = [#tpu.dimension_semantics<parallel>], iteration_bounds = array<i64: 2>, scalar_prefetch = 0 : i64, scratch_operands = 0 : i64, tpu.core_type = #tpu.core_type<tc>, window_params = [{transform_indices = @transform_0, window_bounds = array<i64: 256, 256>}, {pipeline_mode = #tpu.pipeline_mode<synchronous>, transform_indices = @transform_1, window_bounds = array<i64: 256, 128>}, {transform_indices = @transform_2, window_bounds = array<i64: 256, 128>}, {transform_indices = @transform_3, window_bounds = array<i64: 1, 2, 128>}]} {
    %c0 = arith.constant 0 : index
    %c0_0 = arith.constant 0 : index
    %0 = vector.load %arg1[%c0, %c0_0] : memref<256x256xbf16, #tpu.memory_space<vmem>>, vector<256x256xbf16>
    %c0_1 = arith.constant 0 : index
    %c0_2 = arith.constant 0 : index
    %1 = vector.load %arg2[%c0_1, %c0_2] : memref<256x128xbf16, #tpu.memory_space<vmem>>, vector<256x128xbf16>
    %cst = arith.constant dense<0.000000e+00> : vector<256x128xf32>
    %2 = tpu.matmul %0, %1, %cst {dimension_numbers = #tpu.dot_dimension_numbers<[1], [0], [0], [1], [0, 0, 1, 1], [], []>} : vector<256x256xbf16>, vector<256x128xbf16>, vector<256x128xf32> -> vector<256x128xf32>
    %c0_3 = arith.constant 0 : index
    %c0_4 = arith.constant 0 : index
    %3 = vector.load %arg3[%c0_3, %c0_4] : memref<256x128xf32, #tpu.memory_space<vmem>>, vector<256x128xf32>
    tpu.vector_store %arg3[%c0_3, %c0_4], %2 {strides = array<i32>} : memref<256x128xf32, #tpu.memory_space<vmem>>, vector<256x128xf32>,
    %cst_5 = arith.constant dense<0.000000e+00> : vector<128xf32>
    %4 = vector.multi_reduction <add>, %2, %cst_5 [0] : vector<256x128xf32> to vector<128xf32>
    %5 = vector.shape_cast %4 : vector<128xf32> to vector<1x128xf32>
    %6 = arith.mulf %2, %2 : vector<256x128xf32>
    %cst_6 = arith.constant dense<0.000000e+00> : vector<128xf32>
    %7 = vector.multi_reduction <add>, %6, %cst_6 [0] : vector<256x128xf32> to vector<128xf32>
    %8 = vector.shape_cast %7 : vector<128xf32> to vector<1x128xf32>
    %9 = vector.shape_cast %5 : vector<1x128xf32> to vector<1x1x128xf32>
    %c0_7 = arith.constant 0 : index
    %c0_8 = arith.constant 0 : index
    %c0_9 = arith.constant 0 : index
    %10 = vector.load %arg4[%c0_7, %c0_8, %c0_9] : memref<1x2x128xf32, #tpu.memory_space<vmem>>, vector<1x1x128xf32>
    tpu.vector_store %arg4[%c0_7, %c0_8, %c0_9], %9 {strides = array<i32>} : memref<1x2x128xf32, #tpu.memory_space<vmem>>, vector<1x1x128xf32>,
    %11 = vector.shape_cast %8 : vector<1x128xf32> to vector<1x1x128xf32>
    %c0_10 = arith.constant 0 : index
    %c1 = arith.constant 1 : index
    %c0_11 = arith.constant 0 : index
    %12 = vector.load %arg4[%c0_10, %c1, %c0_11] : memref<1x2x128xf32, #tpu.memory_space<vmem>>, vector<1x1x128xf32>
    tpu.vector_store %arg4[%c0_10, %c1, %c0_11], %11 {strides = array<i32>} : memref<1x2x128xf32, #tpu.memory_space<vmem>>, vector<1x1x128xf32>,
    return
  }
  func.func @transform_0(%arg0: i32) -> (i32, i32) {
    %c0_i32 = arith.constant 0 : i32
    %c0_i32_0 = arith.constant 0 : i32
    return %arg0, %c0_i32 : i32, i32
  }
  func.func @transform_1(%arg0: i32) -> (i32, i32) {
    %c0_i32 = arith.constant 0 : i32
    %c0_i32_0 = arith.constant 0 : i32
    %c0_i32_1 = arith.constant 0 : i32
    return %c0_i32, %c0_i32_0 : i32, i32
  }
  func.func @transform_2(%arg0: i32) -> (i32, i32) {
    %c0_i32 = arith.constant 0 : i32
    %c0_i32_0 = arith.constant 0 : i32
    return %arg0, %c0_i32 : i32, i32
  }
  func.func @transform_3(%arg0: i32) -> (i32, i32, i32) {
    %c0_i32 = arith.constant 0 : i32
    %c0_i32_0 = arith.constant 0 : i32
    %c0_i32_1 = arith.constant 0 : i32
    return %arg0, %c0_i32, %c0_i32_0 : i32, i32, i32
  }
}

module attributes {stable_mosaic.version = 11 : i64} {
  func.func @bn_relu_pool_kernel(%arg0: i32, %arg1: memref<1x128xf32, #tpu.memory_space<vmem>>, %arg2: memref<1x128xf32, #tpu.memory_space<vmem>>, %arg3: memref<1x8x8x128xf32, #tpu.memory_space<vmem>>, %arg4: memref<1x8x8x128xf32, #tpu.memory_space<vmem>>, %arg5: memref<10x10x128xf32, #tpu.memory_space<vmem>>) attributes {dimension_semantics = [#tpu.dimension_semantics<parallel>], iteration_bounds = array<i64: 8>, scalar_prefetch = 0 : i64, scratch_operands = 1 : i64, tpu.core_type = #tpu.core_type<tc>, window_params = [{pipeline_mode = #tpu.pipeline_mode<synchronous>, transform_indices = @transform_0, window_bounds = array<i64: 1, 128>}, {pipeline_mode = #tpu.pipeline_mode<synchronous>, transform_indices = @transform_1, window_bounds = array<i64: 1, 128>}, {transform_indices = @transform_2, window_bounds = array<i64: 1, 8, 8, 128>}, {transform_indices = @transform_3, window_bounds = array<i64: 1, 8, 8, 128>}]} {
    %cst = arith.constant 0.000000e+00 : f32
    %0 = vector.broadcast %cst : f32 to vector<10x10x128xf32>
    %c0 = arith.constant 0 : index
    %c0_0 = arith.constant 0 : index
    %c0_1 = arith.constant 0 : index
    %1 = vector.load %arg5[%c0, %c0_0, %c0_1] : memref<10x10x128xf32, #tpu.memory_space<vmem>>, vector<10x10x128xf32>
    tpu.vector_store %arg5[%c0, %c0_0, %c0_1], %0 {strides = array<i32>} : memref<10x10x128xf32, #tpu.memory_space<vmem>>, vector<10x10x128xf32>,
    %c0_2 = arith.constant 0 : index
    %c0_3 = arith.constant 0 : index
    %c0_4 = arith.constant 0 : index
    %c0_5 = arith.constant 0 : index
    %2 = vector.load %arg3[%c0_2, %c0_3, %c0_4, %c0_5] : memref<1x8x8x128xf32, #tpu.memory_space<vmem>>, vector<1x8x8x128xf32>
    %3 = vector.shape_cast %2 : vector<1x8x8x128xf32> to vector<8x8x128xf32>
    %c0_6 = arith.constant 0 : index
    %c0_7 = arith.constant 0 : index
    %4 = vector.load %arg1[%c0_6, %c0_7] : memref<1x128xf32, #tpu.memory_space<vmem>>, vector<1x128xf32>
    %5 = vector.shape_cast %4 : vector<1x128xf32> to vector<1x1x128xf32>
    %6 = vector.broadcast %5 : vector<1x1x128xf32> to vector<8x8x128xf32>
    %7 = arith.mulf %3, %6 : vector<8x8x128xf32>
    %c0_8 = arith.constant 0 : index
    %c0_9 = arith.constant 0 : index
    %8 = vector.load %arg2[%c0_8, %c0_9] : memref<1x128xf32, #tpu.memory_space<vmem>>, vector<1x128xf32>
    %9 = vector.shape_cast %8 : vector<1x128xf32> to vector<1x1x128xf32>
    %10 = vector.broadcast %9 : vector<1x1x128xf32> to vector<8x8x128xf32>
    %11 = arith.addf %7, %10 : vector<8x8x128xf32>
    %cst_10 = arith.constant 0.000000e+00 : f32
    %12 = vector.broadcast %cst_10 : f32 to vector<8x8x128xf32>
    %13 = arith.maximumf %11, %12 : vector<8x8x128xf32>
    %c1 = arith.constant 1 : index
    %c1_11 = arith.constant 1 : index
    %c0_12 = arith.constant 0 : index
    %14 = vector.load %arg5[%c1, %c1_11, %c0_12] : memref<10x10x128xf32, #tpu.memory_space<vmem>>, vector<8x8x128xf32>
    tpu.vector_store %arg5[%c1, %c1_11, %c0_12], %13 {strides = array<i32>} : memref<10x10x128xf32, #tpu.memory_space<vmem>>, vector<8x8x128xf32>,
    %c0_13 = arith.constant 0 : index
    %c0_14 = arith.constant 0 : index
    %c0_15 = arith.constant 0 : index
    %15 = vector.load %arg5[%c0_13, %c0_14, %c0_15] : memref<10x10x128xf32, #tpu.memory_space<vmem>>, vector<10x10x128xf32>
    %16 = vector.extract_strided_slice %15 {offsets = [0, 0, 0], sizes = [8, 10, 128], strides = [1, 1, 1]} : vector<10x10x128xf32> to vector<8x10x128xf32>
    %17 = vector.extract_strided_slice %15 {offsets = [1, 0, 0], sizes = [8, 10, 128], strides = [1, 1, 1]} : vector<10x10x128xf32> to vector<8x10x128xf32>
    %18 = arith.maximumf %16, %17 : vector<8x10x128xf32>
    %19 = vector.extract_strided_slice %15 {offsets = [2, 0, 0], sizes = [8, 10, 128], strides = [1, 1, 1]} : vector<10x10x128xf32> to vector<8x10x128xf32>
    %20 = arith.maximumf %18, %19 : vector<8x10x128xf32>
    %21 = vector.extract_strided_slice %20 {offsets = [0, 0, 0], sizes = [8, 8, 128], strides = [1, 1, 1]} : vector<8x10x128xf32> to vector<8x8x128xf32>
    %22 = vector.extract_strided_slice %20 {offsets = [0, 1, 0], sizes = [8, 8, 128], strides = [1, 1, 1]} : vector<8x10x128xf32> to vector<8x8x128xf32>
    %23 = arith.maximumf %21, %22 : vector<8x8x128xf32>
    %24 = vector.extract_strided_slice %20 {offsets = [0, 2, 0], sizes = [8, 8, 128], strides = [1, 1, 1]} : vector<8x10x128xf32> to vector<8x8x128xf32>
    %25 = arith.maximumf %23, %24 : vector<8x8x128xf32>
    %c0_16 = arith.constant 0 : index
    %c0_17 = arith.constant 0 : index
    %c0_18 = arith.constant 0 : index
    %c0_19 = arith.constant 0 : index
    %26 = vector.load %arg4[%c0_16, %c0_17, %c0_18, %c0_19] : memref<1x8x8x128xf32, #tpu.memory_space<vmem>>, vector<1x8x8x128xf32>
    %27 = vector.shape_cast %26 : vector<1x8x8x128xf32> to vector<8x8x128xf32>
    %28 = vector.shape_cast %25 : vector<8x8x128xf32> to vector<1x8x8x128xf32>
    tpu.vector_store %arg4[%c0_16, %c0_17, %c0_18, %c0_19], %28 {strides = array<i32>} : memref<1x8x8x128xf32, #tpu.memory_space<vmem>>, vector<1x8x8x128xf32>,
    return
  }
  func.func @transform_0(%arg0: i32) -> (i32, i32) {
    %c0_i32 = arith.constant 0 : i32
    %c0_i32_0 = arith.constant 0 : i32
    %c0_i32_1 = arith.constant 0 : i32
    return %c0_i32, %c0_i32_0 : i32, i32
  }
  func.func @transform_1(%arg0: i32) -> (i32, i32) {
    %c0_i32 = arith.constant 0 : i32
    %c0_i32_0 = arith.constant 0 : i32
    %c0_i32_1 = arith.constant 0 : i32
    return %c0_i32, %c0_i32_0 : i32, i32
  }
  func.func @transform_2(%arg0: i32) -> (i32, i32, i32, i32) {
    %c0_i32 = arith.constant 0 : i32
    %c0_i32_0 = arith.constant 0 : i32
    %c0_i32_1 = arith.constant 0 : i32
    %c0_i32_2 = arith.constant 0 : i32
    return %arg0, %c0_i32, %c0_i32_0, %c0_i32_1 : i32, i32, i32, i32
  }
  func.func @transform_3(%arg0: i32) -> (i32, i32, i32, i32) {
    %c0_i32 = arith.constant 0 : i32
    %c0_i32_0 = arith.constant 0 : i32
    %c0_i32_1 = arith.constant 0 : i32
    %c0_i32_2 = arith.constant 0 : i32
    return %arg0, %c0_i32, %c0_i32_0, %c0_i32_1 : i32, i32, i32, i32
  }
}

</mosaic_0001>

<llo_original>
// kernel: frontend3d_pallas.3
$region0: #{frontend3d_pallas.3}
  #allocation0 [shape = 'u32[]', space=smem, size = 0x4, offset = 0x4, fixed_abs, tag = 'smem constant byte address 0x4 - core index']
  #allocation1 [shape = 'u32[144,128]{1,0:T(1,128)}', space=vmem, size = 0x12000, scoped, tag = 'internal scratch']
  #allocation2 [shape = 'f32[10,10,128]{2,1,0:T(8,128)}', space=vmem, size = 0x14000, scoped, tag = 'scratch operand']
  %s0 = inlined_call_operand.vmem [shape: f32[1,128], index: 0, kind: input, shape index: {}]
  %s1 = inlined_call_operand.vmem [shape: f32[1,128], index: 1, kind: input, shape index: {}]
  %s2 = inlined_call_operand.vmem [shape: f32[8,8,8,128], index: 2, kind: input, shape index: {}]
  %s3 = inlined_call_operand.vmem [shape: f32[8,8,8,128], index: 3, kind: output, shape index: {}]
  %s4 = sld [smem:[#allocation0]]
  $region45: #{frontend3d_pallas.3} parent=0
    _
  %s6 = ssub.s32 1, %s4
  %s7 = scalar_select 0, %s6, %s4
  loop: start=0, step=1, limit=10
  $region2: #{frontend3d_pallas.3} parent=0 // loop_pre_header
    _
  $region3: #{frontend3d_pallas.3} parent=0 // loop_header
    %s9 = sphi 0, %s13
    %p10 = scmp.ge.s32.totalorder %s9, 10
    %s17 = sphi 0, %s17
    %s19 = sphi 0, %s17
    %s20 = sphi 0, %s19
    %s34 = sphi 0, %s20
    %s38 = sphi 0, %s38
    %s40 = sphi 0, %s38
    %s41 = sphi 0, %s40
    %s55 = sphi 0, %s41
    %s61 = sphi 0, %s63
    %s64 = sphi 0, %s61
    %s65 = sphi 0, %s64
    %s81 = sphi 0, %s65
    %s87 = sphi 0, %s89
    %s90 = sphi 0, %s87
    %s91 = sphi 0, %s90
    %s107 = sphi 0, %s91
  $region4: #{frontend3d_pallas.3} parent=0 // loop_header_branch
    %12 = sbr.rel (%p10) target = $region8
  $region5: #{frontend3d_pallas.3} parent=0 // loop_body
    %s14 = ssub.s32 %s9, 1
    %s15 = ssub.s32 %s9, 2
    %s16 = sadd.s32 %s9, 1
    %s18 = sadd.s32 %s17, 1
    %p21 = scmp.eq.s32.totalorder %s9, 7
    %p22 = scmp.ne.s32.totalorder %s17, %s19
    %p23 = scmp.eq.s32.totalorder %s9, 0
    %p24 = por %p22, %p23
    %p25 = scmp.ne.s32.totalorder %s17, %s19
    %p26 = scmp.eq.s32.totalorder %s14, 7
    %p27 = por %p25, %p26
    %p28 = scmp.ne.s32.totalorder %s19, %s20
    %p29 = scmp.eq.s32.totalorder %s14, 0
    %p30 = por %p28, %p29
    %p31 = scmp.ne.s32.totalorder %s19, %s20
    %p32 = scmp.eq.s32.totalorder %s15, 7
    %p33 = por %p31, %p32
    %p35 = scmp.ne.s32.totalorder %s20, %s34
    %p36 = scmp.eq.s32.totalorder %s15, 0
    %p37 = por %p35, %p36
    %s39 = sadd.s32 %s38, 1
    %p42 = scmp.eq.s32.totalorder %s9, 7
    %p43 = scmp.ne.s32.totalorder %s38, %s40
    %p44 = scmp.eq.s32.totalorder %s9, 0
    %p45 = por %p43, %p44
    %p46 = scmp.ne.s32.totalorder %s38, %s40
    %p47 = scmp.eq.s32.totalorder %s14, 7
    %p48 = por %p46, %p47
    %p49 = scmp.ne.s32.totalorder %s40, %s41
    %p50 = scmp.eq.s32.totalorder %s14, 0
    %p51 = por %p49, %p50
    %p52 = scmp.ne.s32.totalorder %s40, %s41
    %p53 = scmp.eq.s32.totalorder %s15, 7
    %p54 = por %p52, %p53
    %p56 = scmp.ne.s32.totalorder %s41, %s55
    %p57 = scmp.eq.s32.totalorder %s15, 0
    %p58 = por %p56, %p57
    %s59 = ssub.s32 %s9, %s16
    %p60 = scmp.eq.s32.totalorder %s59, 0
    %s62 = sadd.s32 %s61, 1
    %s63 = scalar_select %p60, %s61, %s62
    %p66 = pneg %p60
    %p67 = scmp.eq.s32.totalorder %s9, 7
    %p68 = por %p66, %p67
    %p69 = scmp.ne.s32.totalorder %s61, %s64
    %p70 = scmp.eq.s32.totalorder %s9, 0
    %p71 = por %p69, %p70
    %p72 = scmp.ne.s32.totalorder %s61, %s64
    %p73 = scmp.eq.s32.totalorder %s14, 7
    %p74 = por %p72, %p73
    %p75 = scmp.ne.s32.totalorder %s64, %s65
    %p76 = scmp.eq.s32.totalorder %s14, 0
    %p77 = por %p75, %p76
    %p78 = scmp.ne.s32.totalorder %s64, %s65
    %p79 = scmp.eq.s32.totalorder %s15, 7
    %p80 = por %p78, %p79
    %p82 = scmp.ne.s32.totalorder %s65, %s81
    %p83 = scmp.eq.s32.totalorder %s15, 0
    %p84 = por %p82, %p83
    %s85 = ssub.s32 %s9, %s16
    %p86 = scmp.eq.s32.totalorder %s85, 0
    %s88 = sadd.s32 %s87, 1
    %s89 = scalar_select %p86, %s87, %s88
    %p92 = pneg %p86
    %p93 = scmp.eq.s32.totalorder %s9, 7
    %p94 = por %p92, %p93
    %p95 = scmp.ne.s32.totalorder %s87, %s90
    %p96 = scmp.eq.s32.totalorder %s9, 0
    %p97 = por %p95, %p96
    %p98 = scmp.ne.s32.totalorder %s87, %s90
    %p99 = scmp.eq.s32.totalorder %s14, 7
    %p100 = por %p98, %p99
    %p101 = scmp.ne.s32.totalorder %s90, %s91
    %p102 = scmp.eq.s32.totalorder %s14, 0
    %p103 = por %p101, %p102
    %p104 = scmp.ne.s32.totalorder %s90, %s91
    %p105 = scmp.eq.s32.totalorder %s15, 7
    %p106 = por %p104, %p105
    %p108 = scmp.ne.s32.totalorder %s91, %s107
    %p109 = scmp.eq.s32.totalorder %s15, 0
    %p110 = por %p108, %p109
    %p111 = scmp.le.s32.totalorder 1, %s9
    %p112 = scmp.lt.s32.totalorder %s9, 9
    %p113 = pnand %p111, %p112
    %p114 = pneg %p113
    // Predicated region
    $region9: #{frontend3d_pallas.3} parent=5 // pred_check
      _
    $region10: #{frontend3d_pallas.3} parent=5 // pred_check_branch
      %116 = sbr.rel (%p113) target = $region12
    $region11: #{frontend3d_pallas.3} parent=5 // pred_region
      %s117 = ssub.s32 %s9, 1
      // Predicated region
      $region13: #{frontend3d_pallas.3} parent=11 // pred_check
        %p118 = pneg %p30
      $region14: #{frontend3d_pallas.3} parent=11 // pred_check_branch
        %120 = sbr.rel (%p118) target = $region16
      $region15: #{frontend3d_pallas.3} parent=11 // pred_region
        _
      $region16: #{frontend3d_pallas.3} parent=11 // pred_fallthru
        _
      // Predicated region
      $region17: #{frontend3d_pallas.3} parent=11 // pred_check
        %p121 = pneg %p51
      $region18: #{frontend3d_pallas.3} parent=11 // pred_check_branch
        %123 = sbr.rel (%p121) target = $region20
      $region19: #{frontend3d_pallas.3} parent=11 // pred_region
        _
      $region20: #{frontend3d_pallas.3} parent=11 // pred_fallthru
        _
    $region12: #{frontend3d_pallas.3} parent=5 // pred_fallthru
      _
    %p124 = scmp.lt.s32.totalorder %s9, 8
    // Predicated region
    $region21: #{frontend3d_pallas.3} parent=5 // pred_check
      %p125 = pneg %p124
    $region22: #{frontend3d_pallas.3} parent=5 // pred_check_branch
      %127 = sbr.rel (%p125) target = $region24
    $region23: #{frontend3d_pallas.3} parent=5 // pred_region
      // Predicated region
      $region25: #{frontend3d_pallas.3} parent=23 // pred_check
        %p128 = pneg %p71
      $region26: #{frontend3d_pallas.3} parent=23 // pred_check_branch
        %130 = sbr.rel (%p128) target = $region28
      $region27: #{frontend3d_pallas.3} parent=23 // pred_region
        %p131 = scmp.lt.s32.totalorder %s9, 7
        %s132 = scalar_select %p131, %s9, 7
        %s133 = smul.addr %s132, 8
        %s134 = smul.addr %s133, 8
        %s135 = scalar_lea.vmem %s2, %s134
      $region28: #{frontend3d_pallas.3} parent=23 // pred_fallthru
        _
    $region24: #{frontend3d_pallas.3} parent=5 // pred_fallthru
      _
    %p136 = scmp.le.s32.totalorder 1, %s9
    %p137 = scmp.lt.s32.totalorder %s9, 9
    %p138 = pnand %p136, %p137
    %p139 = pneg %p138
    // Predicated region
    $region29: #{frontend3d_pallas.3} parent=5 // pred_check
      _
    $region30: #{frontend3d_pallas.3} parent=5 // pred_check_branch
      %141 = sbr.rel (%p138) target = $region32
    $region31: #{frontend3d_pallas.3} parent=5 // pred_region
      %s142 = ssub.s32 %s9, 1
      %p143 = pneg %p30
      %p144 = pneg %p27
      %p145 = pneg %p51
      %p146 = pneg %p48
      %p147 = scmp.lt.s32.totalorder %s14, 7
      %s148 = scalar_select %p147, %s14, 7
      %s149 = smul.addr %s148, 8
      %s150 = smul.addr %s149, 8
      %s151 = scalar_lea.vmem %s2, %s150
      %p152 = pneg %p77
      %p153 = pneg %p74
      %p154 = pneg %p103
      %p155 = pneg %p100
      %p156 = scmp.lt.s32.totalorder %s14, 7
      %s157 = scalar_select %p156, %s14, 7
      %s158 = smul.addr %s157, 8
      %s159 = smul.addr %s158, 8
      %s160 = scalar_lea.vmem %s3, %s159
      %p161 = scmp.lt.s32.totalorder %s14, 7
      %s162 = scalar_select %p161, %s14, 7
      %s163 = smul.addr %s162, 8
      %s164 = smul.addr %s163, 8
      %s165 = scalar_lea.vmem %s2, %s164
      %p166 = scmp.lt.s32.totalorder %s14, 7
      %s167 = scalar_select %p166, %s14, 7
      %s168 = smul.addr %s167, 8
      %s169 = smul.addr %s168, 8
      %s170 = scalar_lea.vmem %s3, %s169
      %171 = vst [vmem:[#allocation2] sm:$0xff] 0.0
      %172 = vst [vmem:[#allocation2 + $0x8] sm:$0x3] 0.0
      %173 = vst [vmem:[#allocation2 + $0x10] sm:$0xff] 0.0
      %174 = vst [vmem:[#allocation2 + $0x18] sm:$0x3] 0.0
      %175 = vst [vmem:[#allocation2 + $0x20] sm:$0xff] 0.0
      %176 = vst [vmem:[#allocation2 + $0x28] sm:$0x3] 0.0
      %177 = vst [vmem:[#allocation2 + $0x30] sm:$0xff] 0.0
      %178 = vst [vmem:[#allocation2 + $0x38] sm:$0x3] 0.0
      %179 = vst [vmem:[#allocation2 + $0x40] sm:$0xff] 0.0
      %180 = vst [vmem:[#allocation2 + $0x48] sm:$0x3] 0.0
      %181 = vst [vmem:[#allocation2 + $0x50] sm:$0xff] 0.0
      %182 = vst [vmem:[#allocation2 + $0x58] sm:$0x3] 0.0
      %183 = vst [vmem:[#allocation2 + $0x60] sm:$0xff] 0.0
      %184 = vst [vmem:[#allocation2 + $0x68] sm:$0x3] 0.0
      %185 = vst [vmem:[#allocation2 + $0x70] sm:$0xff] 0.0
      %186 = vst [vmem:[#allocation2 + $0x78] sm:$0x3] 0.0
      %187 = vst [vmem:[#allocation2 + $0x80] sm:$0xff] 0.0
      %188 = vst [vmem:[#allocation2 + $0x88] sm:$0x3] 0.0
      %189 = vst [vmem:[#allocation2 + $0x90] sm:$0xff] 0.0
      %190 = vst [vmem:[#allocation2 + $0x98] sm:$0x3] 0.0
      %v191 = vld [vmem:[%s165] sm:$0xff]
      %v192 = vld [vmem:[%s165 + $0x8] sm:$0xff]
      %v193 = vld [vmem:[%s165 + $0x10] sm:$0xff]
      %v194 = vld [vmem:[%s165 + $0x18] sm:$0xff]
      %v195 = vld [vmem:[%s165 + $0x20] sm:$0xff]
      %v196 = vld [vmem:[%s165 + $0x28] sm:$0xff]
      %v197 = vld [vmem:[%s165 + $0x30] sm:$0xff]
      %v198 = vld [vmem:[%s165 + $0x38] sm:$0xff]
      %v199 = vld [vmem:[%s0] sm:$0x1]
      %v201 = vlaneseq
      %v202 = vshrl.u32 %v201, 7
      %v203 = vsub.s32 0, %v202
      %v204 = vrot.slane %v199, %v203
      %v206 = vmul.f32 %v191, %v204
      %v207 = vmul.f32 %v192, %v204
      %v208 = vmul.f32 %v193, %v204
      %v209 = vmul.f32 %v194, %v204
      %v210 = vmul.f32 %v195, %v204
      %v211 = vmul.f32 %v196, %v204
      %v212 = vmul.f32 %v197, %v204
      %v213 = vmul.f32 %v198, %v204
      %v214 = vld [vmem:[%s1] sm:$0x1]
      %v216 = vlaneseq
      %v217 = vshrl.u32 %v216, 7
      %v218 = vsub.s32 0, %v217
      %v219 = vrot.slane %v214, %v218
      %v221 = vadd.f32 %v206, %v219
      %v222 = vadd.f32 %v207, %v219
      %v223 = vadd.f32 %v208, %v219
      %v224 = vadd.f32 %v209, %v219
      %v225 = vadd.f32 %v210, %v219
      %v226 = vadd.f32 %v211, %v219
      %v227 = vadd.f32 %v212, %v219
      %v228 = vadd.f32 %v213, %v219
      %v229 = vmax.f32 %v221, 0.0
      %v230 = vmax.f32 %v222, 0.0
      %v231 = vmax.f32 %v223, 0.0
      %v232 = vmax.f32 %v224, 0.0
      %v233 = vmax.f32 %v225, 0.0
      %v234 = vmax.f32 %v226, 0.0
      %v235 = vmax.f32 %v227, 0.0
      %v236 = vmax.f32 %v228, 0.0
      %s237 = scalar_lea.vmem [#allocation2], 16
      %238 = vst [vmem:[%s237 + $0x1] sm:$0xff] %v229
      %239 = vst [vmem:[%s237 + $0x11] sm:$0xff] %v230
      %240 = vst [vmem:[%s237 + $0x21] sm:$0xff] %v231
      %241 = vst [vmem:[%s237 + $0x31] sm:$0xff] %v232
      %242 = vst [vmem:[%s237 + $0x41] sm:$0xff] %v233
      %243 = vst [vmem:[%s237 + $0x51] sm:$0xff] %v234
      %244 = vst [vmem:[%s237 + $0x61] sm:$0xff] %v235
      %245 = vst [vmem:[%s237 + $0x71] sm:$0xff] %v236
      %v246 = vld [vmem:[#allocation2] sm:$0xff]
      %v247 = vld [vmem:[#allocation2 + $0x8] sm:$0x3]
      %v248 = vld [vmem:[#allocation2 + $0x10] sm:$0xff]
      %v249 = vld [vmem:[#allocation2 + $0x18] sm:$0x3]
      %v250 = vld [vmem:[#allocation2 + $0x20] sm:$0xff]
      %v251 = vld [vmem:[#allocation2 + $0x28] sm:$0x3]
      %v252 = vld [vmem:[#allocation2 + $0x30] sm:$0xff]
      %v253 = vld [vmem:[#allocation2 + $0x38] sm:$0x3]
      %v254 = vld [vmem:[#allocation2 + $0x40] sm:$0xff]
      %v255 = vld [vmem:[#allocation2 + $0x48] sm:$0x3]
      %v256 = vld [vmem:[#allocation2 + $0x50] sm:$0xff]
      %v257 = vld [vmem:[#allocation2 + $0x58] sm:$0x3]
      %v258 = vld [vmem:[#allocation2 + $0x60] sm:$0xff]
      %v259 = vld [vmem:[#allocation2 + $0x68] sm:$0x3]
      %v260 = vld [vmem:[#allocation2 + $0x70] sm:$0xff]
      %v261 = vld [vmem:[#allocation2 + $0x78] sm:$0x3]
      %v262 = vld [vmem:[#allocation2 + $0x80] sm:$0xff]
      %v263 = vld [vmem:[#allocation2 + $0x88] sm:$0x3]
      %v264 = vld [vmem:[#allocation2 + $0x90] sm:$0xff]
      %v265 = vld [vmem:[#allocation2 + $0x98] sm:$0x3]
      %v266 = vmax.f32 %v246, %v248
      %v267 = vmax.f32 %v247, %v249
      %v268 = vmax.f32 %v248, %v250
      %v269 = vmax.f32 %v249, %v251
      %v270 = vmax.f32 %v250, %v252
      %v271 = vmax.f32 %v251, %v253
      %v272 = vmax.f32 %v252, %v254
      %v273 = vmax.f32 %v253, %v255
      %v274 = vmax.f32 %v254, %v256
      %v275 = vmax.f32 %v255, %v257
      %v276 = vmax.f32 %v256, %v258
      %v277 = vmax.f32 %v257, %v259
      %v278 = vmax.f32 %v258, %v260
      %v279 = vmax.f32 %v259, %v261
      %v280 = vmax.f32 %v260, %v262
      %v281 = vmax.f32 %v261, %v263
      %v282 = vmax.f32 %v266, %v250
      %v283 = vmax.f32 %v267, %v251
      %v284 = vmax.f32 %v268, %v252
      %v285 = vmax.f32 %v269, %v253
      %v286 = vmax.f32 %v270, %v254
      %v287 = vmax.f32 %v271, %v255
      %v288 = vmax.f32 %v272, %v256
      %v289 = vmax.f32 %v273, %v257
      %v290 = vmax.f32 %v274, %v258
      %v291 = vmax.f32 %v275, %v259
      %v292 = vmax.f32 %v276, %v260
      %v293 = vmax.f32 %v277, %v261
      %v294 = vmax.f32 %v278, %v262
      %v295 = vmax.f32 %v279, %v263
      %v296 = vmax.f32 %v280, %v264
      %v297 = vmax.f32 %v281, %v265
      %vm314 = vcmask 1046528
      %v315 = vrot.slane %v282, 1
      %v316 = vrot.slane %v283, 1
      %v317 = vsel %vm314, %v315, %v316
      %v318 = vrot.slane %v284, 1
      %v319 = vrot.slane %v285, 1
      %v320 = vsel %vm314, %v318, %v319
      %v321 = vrot.slane %v286, 1
      %v322 = vrot.slane %v287, 1
      %v323 = vsel %vm314, %v321, %v322
      %v324 = vrot.slane %v288, 1
      %v325 = vrot.slane %v289, 1
      %v326 = vsel %vm314, %v324, %v325
      %v327 = vrot.slane %v290, 1
      %v328 = vrot.slane %v291, 1
      %v329 = vsel %vm314, %v327, %v328
      %v330 = vrot.slane %v292, 1
      %v331 = vrot.slane %v293, 1
      %v332 = vsel %vm314, %v330, %v331
      %v333 = vrot.slane %v294, 1
      %v334 = vrot.slane %v295, 1
      %v335 = vsel %vm314, %v333, %v334
      %v336 = vrot.slane %v296, 1
      %v337 = vrot.slane %v297, 1
      %v338 = vsel %vm314, %v336, %v337
      %v347 = vmax.f32 %v282, %v317
      %v348 = vmax.f32 %v284, %v320
      %v349 = vmax.f32 %v286, %v323
      %v350 = vmax.f32 %v288, %v326
      %v351 = vmax.f32 %v290, %v329
      %v352 = vmax.f32 %v292, %v332
      %v353 = vmax.f32 %v294, %v335
      %v354 = vmax.f32 %v296, %v338
      %vm355 = vcmask 1045504
      %v356 = vrot.slane %v282, 2
      %v357 = vrot.slane %v283, 2
      %v358 = vsel %vm355, %v356, %v357
      %v359 = vrot.slane %v284, 2
      %v360 = vrot.slane %v285, 2
      %v361 = vsel %vm355, %v359, %v360
      %v362 = vrot.slane %v286, 2
      %v363 = vrot.slane %v287, 2
      %v364 = vsel %vm355, %v362, %v363
      %v365 = vrot.slane %v288, 2
      %v366 = vrot.slane %v289, 2
      %v367 = vsel %vm355, %v365, %v366
      %v368 = vrot.slane %v290, 2
      %v369 = vrot.slane %v291, 2
      %v370 = vsel %vm355, %v368, %v369
      %v371 = vrot.slane %v292, 2
      %v372 = vrot.slane %v293, 2
      %v373 = vsel %vm355, %v371, %v372
      %v374 = vrot.slane %v294, 2
      %v375 = vrot.slane %v295, 2
      %v376 = vsel %vm355, %v374, %v375
      %v377 = vrot.slane %v296, 2
      %v378 = vrot.slane %v297, 2
      %v379 = vsel %vm355, %v377, %v378
      %v388 = vmax.f32 %v347, %v358
      %v389 = vmax.f32 %v348, %v361
      %v390 = vmax.f32 %v349, %v364
      %v391 = vmax.f32 %v350, %v367
      %v392 = vmax.f32 %v351, %v370
      %v393 = vmax.f32 %v352, %v373
      %v394 = vmax.f32 %v353, %v376
      %v395 = vmax.f32 %v354, %v379
      %396 = vst [vmem:[%s170] sm:$0xff] %v388
      %397 = vst [vmem:[%s170 + $0x8] sm:$0xff] %v389
      %398 = vst [vmem:[%s170 + $0x10] sm:$0xff] %v390
      %399 = vst [vmem:[%s170 + $0x18] sm:$0xff] %v391
      %400 = vst [vmem:[%s170 + $0x20] sm:$0xff] %v392
      %401 = vst [vmem:[%s170 + $0x28] sm:$0xff] %v393
      %402 = vst [vmem:[%s170 + $0x30] sm:$0xff] %v394
      %403 = vst [vmem:[%s170 + $0x38] sm:$0xff] %v395
      %p404 = scmp.lt.s32.totalorder %s14, 7
      %s405 = scalar_select %p404, %s14, 7
      %s406 = smul.addr %s405, 8
      %s407 = smul.addr %s406, 8
      %s408 = scalar_lea.vmem %s3, %s407
      // Predicated region
      $region33: #{frontend3d_pallas.3} parent=31 // pred_check
        %p409 = pneg %p100
      $region34: #{frontend3d_pallas.3} parent=31 // pred_check_branch
        %411 = sbr.rel (%p409) target = $region36
      $region35: #{frontend3d_pallas.3} parent=31 // pred_region
        _
      $region36: #{frontend3d_pallas.3} parent=31 // pred_fallthru
        _
    $region32: #{frontend3d_pallas.3} parent=5 // pred_fallthru
      _
    %p412 = scmp.le.s32.totalorder 2, %s9
    // Predicated region
    $region37: #{frontend3d_pallas.3} parent=5 // pred_check
      %p413 = pneg %p412
    $region38: #{frontend3d_pallas.3} parent=5 // pred_check_branch
      %415 = sbr.rel (%p413) target = $region40
    $region39: #{frontend3d_pallas.3} parent=5 // pred_region
      %s416 = ssub.s32 %s9, 2
      // Predicated region
      $region41: #{frontend3d_pallas.3} parent=39 // pred_check
        %p417 = pneg %p106
      $region42: #{frontend3d_pallas.3} parent=39 // pred_check_branch
        %419 = sbr.rel (%p417) target = $region44
      $region43: #{frontend3d_pallas.3} parent=39 // pred_region
        %p420 = scmp.lt.s32.totalorder %s15, 7
        %s421 = scalar_select %p420, %s15, 7
        %s422 = smul.addr %s421, 8
        %s423 = smul.addr %s422, 8
        %s424 = scalar_lea.vmem %s3, %s423
      $region44: #{frontend3d_pallas.3} parent=39 // pred_fallthru
        _
    $region40: #{frontend3d_pallas.3} parent=5 // pred_fallthru
      _
  $region6: #{frontend3d_pallas.3} parent=0 // loop_footer
    %s13 = sadd.s32 1, %s9
  $region7: #{frontend3d_pallas.3} parent=0 // loop_footer_branch
    %8 = sbr.rel target = $region3
  $region8: #{frontend3d_pallas.3} parent=0 // loop_exit
    _

// kernel: frontend3d_pallas.2
$region0: #{frontend3d_pallas.2}
  #allocation0 [shape = 'u32[]', space=smem, size = 0x4, offset = 0x4, fixed_abs, tag = 'smem constant byte address 0x4 - core index']
  #allocation1 [shape = 'u32[144,128]{1,0:T(1,128)}', space=vmem, size = 0x12000, scoped, tag = 'internal scratch']
  %s0 = inlined_call_operand.vmem [shape: bf16[512,256], index: 0, kind: input, shape index: {}]
  %s1 = inlined_call_operand.vmem [shape: bf16[256,128], index: 1, kind: input, shape index: {}]
  %s2 = inlined_call_operand.vmem [shape: f32[512,128], index: 2, kind: output, shape index: {0}]
  %s3 = inlined_call_operand.vmem [shape: f32[2,2,128], index: 3, kind: output, shape index: {1}]
  %4 = xla_tuple %s2, %s3
  %s5 = sld [smem:[#allocation0]]
  $region49: #{frontend3d_pallas.2} parent=0
    _
  %s7 = ssub.s32 1, %s5
  %s8 = scalar_select 0, %s7, %s5
  loop: start=0, step=1, limit=4
  $region2: #{frontend3d_pallas.2} parent=0 // loop_pre_header
    _
  $region3: #{frontend3d_pallas.2} parent=0 // loop_header
    %s10 = sphi 0, %s14
    %p11 = scmp.ge.s32.totalorder %s10, 4
    %s20 = sphi 0, %s22
    %s23 = sphi 0, %s20
    %s24 = sphi 0, %s23
    %s40 = sphi 0, %s24
    %s44 = sphi 0, %s44
    %s46 = sphi 0, %s44
    %s47 = sphi 0, %s46
    %s61 = sphi 0, %s47
    %s67 = sphi 0, %s69
    %s70 = sphi 0, %s67
    %s71 = sphi 0, %s70
    %s87 = sphi 0, %s71
    %s93 = sphi 0, %s95
    %s96 = sphi 0, %s93
    %s97 = sphi 0, %s96
    %s113 = sphi 0, %s97
  $region4: #{frontend3d_pallas.2} parent=0 // loop_header_branch
    %13 = sbr.rel (%p11) target = $region8
  $region5: #{frontend3d_pallas.2} parent=0 // loop_body
    %s15 = ssub.s32 %s10, 1
    %s16 = ssub.s32 %s10, 2
    %s17 = sadd.s32 %s10, 1
    %s18 = ssub.s32 %s10, %s17
    %p19 = scmp.eq.s32.totalorder %s18, 0
    %s21 = sadd.s32 %s20, 1
    %s22 = scalar_select %p19, %s20, %s21
    %p25 = pneg %p19
    %p26 = scmp.eq.s32.totalorder %s10, 1
    %p27 = por %p25, %p26
    %p28 = scmp.ne.s32.totalorder %s20, %s23
    %p29 = scmp.eq.s32.totalorder %s10, 0
    %p30 = por %p28, %p29
    %p31 = scmp.ne.s32.totalorder %s20, %s23
    %p32 = scmp.eq.s32.totalorder %s15, 1
    %p33 = por %p31, %p32
    %p34 = scmp.ne.s32.totalorder %s23, %s24
    %p35 = scmp.eq.s32.totalorder %s15, 0
    %p36 = por %p34, %p35
    %p37 = scmp.ne.s32.totalorder %s23, %s24
    %p38 = scmp.eq.s32.totalorder %s16, 1
    %p39 = por %p37, %p38
    %p41 = scmp.ne.s32.totalorder %s24, %s40
    %p42 = scmp.eq.s32.totalorder %s16, 0
    %p43 = por %p41, %p42
    %s45 = sadd.s32 %s44, 1
    %p48 = scmp.eq.s32.totalorder %s10, 1
    %p49 = scmp.ne.s32.totalorder %s44, %s46
    %p50 = scmp.eq.s32.totalorder %s10, 0
    %p51 = por %p49, %p50
    %p52 = scmp.ne.s32.totalorder %s44, %s46
    %p53 = scmp.eq.s32.totalorder %s15, 1
    %p54 = por %p52, %p53
    %p55 = scmp.ne.s32.totalorder %s46, %s47
    %p56 = scmp.eq.s32.totalorder %s15, 0
    %p57 = por %p55, %p56
    %p58 = scmp.ne.s32.totalorder %s46, %s47
    %p59 = scmp.eq.s32.totalorder %s16, 1
    %p60 = por %p58, %p59
    %p62 = scmp.ne.s32.totalorder %s47, %s61
    %p63 = scmp.eq.s32.totalorder %s16, 0
    %p64 = por %p62, %p63
    %s65 = ssub.s32 %s10, %s17
    %p66 = scmp.eq.s32.totalorder %s65, 0
    %s68 = sadd.s32 %s67, 1
    %s69 = scalar_select %p66, %s67, %s68
    %p72 = pneg %p66
    %p73 = scmp.eq.s32.totalorder %s10, 1
    %p74 = por %p72, %p73
    %p75 = scmp.ne.s32.totalorder %s67, %s70
    %p76 = scmp.eq.s32.totalorder %s10, 0
    %p77 = por %p75, %p76
    %p78 = scmp.ne.s32.totalorder %s67, %s70
    %p79 = scmp.eq.s32.totalorder %s15, 1
    %p80 = por %p78, %p79
    %p81 = scmp.ne.s32.totalorder %s70, %s71
    %p82 = scmp.eq.s32.totalorder %s15, 0
    %p83 = por %p81, %p82
    %p84 = scmp.ne.s32.totalorder %s70, %s71
    %p85 = scmp.eq.s32.totalorder %s16, 1
    %p86 = por %p84, %p85
    %p88 = scmp.ne.s32.totalorder %s71, %s87
    %p89 = scmp.eq.s32.totalorder %s16, 0
    %p90 = por %p88, %p89
    %s91 = ssub.s32 %s10, %s17
    %p92 = scmp.eq.s32.totalorder %s91, 0
    %s94 = sadd.s32 %s93, 1
    %s95 = scalar_select %p92, %s93, %s94
    %p98 = pneg %p92
    %p99 = scmp.eq.s32.totalorder %s10, 1
    %p100 = por %p98, %p99
    %p101 = scmp.ne.s32.totalorder %s93, %s96
    %p102 = scmp.eq.s32.totalorder %s10, 0
    %p103 = por %p101, %p102
    %p104 = scmp.ne.s32.totalorder %s93, %s96
    %p105 = scmp.eq.s32.totalorder %s15, 1
    %p106 = por %p104, %p105
    %p107 = scmp.ne.s32.totalorder %s96, %s97
    %p108 = scmp.eq.s32.totalorder %s15, 0
    %p109 = por %p107, %p108
    %p110 = scmp.ne.s32.totalorder %s96, %s97
    %p111 = scmp.eq.s32.totalorder %s16, 1
    %p112 = por %p110, %p111
    %p114 = scmp.ne.s32.totalorder %s97, %s113
    %p115 = scmp.eq.s32.totalorder %s16, 0
    %p116 = por %p114, %p115
    %p117 = scmp.le.s32.totalorder 1, %s10
    %p118 = scmp.lt.s32.totalorder %s10, 3
    %p119 = pnand %p117, %p118
    %p120 = pneg %p119
    // Predicated region
    $region9: #{frontend3d_pallas.2} parent=5 // pred_check
      _
    $region10: #{frontend3d_pallas.2} parent=5 // pred_check_branch
      %122 = sbr.rel (%p119) target = $region12
    $region11: #{frontend3d_pallas.2} parent=5 // pred_region
      %s123 = ssub.s32 %s10, 1
      // Predicated region
      $region13: #{frontend3d_pallas.2} parent=11 // pred_check
        %p124 = pneg %p57
      $region14: #{frontend3d_pallas.2} parent=11 // pred_check_branch
        %126 = sbr.rel (%p124) target = $region16
      $region15: #{frontend3d_pallas.2} parent=11 // pred_region
        _
      $region16: #{frontend3d_pallas.2} parent=11 // pred_fallthru
        _
    $region12: #{frontend3d_pallas.2} parent=5 // pred_fallthru
      _
    %p127 = scmp.lt.s32.totalorder %s10, 2
    // Predicated region
    $region17: #{frontend3d_pallas.2} parent=5 // pred_check
      %p128 = pneg %p127
    $region18: #{frontend3d_pallas.2} parent=5 // pred_check_branch
      %130 = sbr.rel (%p128) target = $region20
    $region19: #{frontend3d_pallas.2} parent=5 // pred_region
      // Predicated region
      $region21: #{frontend3d_pallas.2} parent=19 // pred_check
        %p131 = pneg %p30
      $region22: #{frontend3d_pallas.2} parent=19 // pred_check_branch
        %133 = sbr.rel (%p131) target = $region24
      $region23: #{frontend3d_pallas.2} parent=19 // pred_region
        %s134 = smul.u32 32, %s10
        %p135 = scmp.lt.s32.totalorder %s134, 63
        %s136 = scalar_select %p135, %s134, 63
        %s137 = smul.addr %s136, 2
        %s138 = smul.addr %s137, 4
        %s139 = scalar_lea.vmem %s0, %s138
        %s140 = smul.u32 32, %s10
      $region24: #{frontend3d_pallas.2} parent=19 // pred_fallthru
        _
    $region20: #{frontend3d_pallas.2} parent=5 // pred_fallthru
      _
    %p141 = scmp.le.s32.totalorder 1, %s10
    %p142 = scmp.lt.s32.totalorder %s10, 3
    %p143 = pnand %p141, %p142
    %p144 = pneg %p143
    // Predicated region
    $region25: #{frontend3d_pallas.2} parent=5 // pred_check
      _
    $region26: #{frontend3d_pallas.2} parent=5 // pred_check_branch
      %146 = sbr.rel (%p143) target = $region28
    $region27: #{frontend3d_pallas.2} parent=5 // pred_region
      %s147 = ssub.s32 %s10, 1
      %s148 = smul.u32 32, %s15
      %p149 = scmp.lt.s32.totalorder %s148, 63
      %s150 = scalar_select %p149, %s148, 63
      %s151 = smul.addr %s150, 2
      %s152 = smul.addr %s151, 4
      %s153 = scalar_lea.vmem %s0, %s152
      %p154 = pneg %p36
      %p155 = pneg %p33
      %p156 = pneg %p57
      %p157 = pneg %p54
      %p158 = pneg %p83
      %p159 = pneg %p80
      %s160 = smul.u32 32, %s15
      %p161 = scmp.lt.s32.totalorder %s160, 63
      %s162 = scalar_select %p161, %s160, 63
      %s163 = smul.addr %s162, 8
      %s164 = scalar_lea.vmem %s2, %s163
      %p165 = pneg %p109
      %p166 = pneg %p106
      %p167 = scmp.lt.s32.totalorder %s15, 1
      %s168 = scalar_select %p167, %s15, 1
      %s169 = smul.addr %s168, 2
      %s170 = scalar_lea.vmem %s3, %s169
      %s171 = smul.u32 32, %s15
      %p172 = scmp.lt.s32.totalorder %s171, 63
      %s173 = scalar_select %p172, %s171, 63
      %s174 = smul.addr %s173, 2
      %s175 = smul.addr %s174, 4
      %s176 = scalar_lea.vmem %s0, %s175
      %s177 = smul.u32 32, %s15
      %s178 = smul.u32 32, %s15
      %p179 = scmp.lt.s32.totalorder %s178, 63
      %s180 = scalar_select %p179, %s178, 63
      %s181 = smul.addr %s180, 8
      %s182 = scalar_lea.vmem %s2, %s181
      %s183 = smul.u32 32, %s15
      %p184 = scmp.lt.s32.totalorder %s15, 1
      %s185 = scalar_select %p184, %s15, 1
      %s186 = smul.addr %s185, 2
      %s187 = scalar_lea.vmem %s3, %s186
      %v189 = vld [vmem:[%s176] sm:$0xff]
      %v190 = vld [vmem:[%s176 + $0x8] sm:$0xff]
      %v191 = vld [vmem:[%s176 + $0x10] sm:$0xff]
      %v192 = vld [vmem:[%s176 + $0x18] sm:$0xff]
      %v193 = vld [vmem:[%s176 + $0x20] sm:$0xff]
      %v194 = vld [vmem:[%s176 + $0x28] sm:$0xff]
      %v195 = vld [vmem:[%s176 + $0x30] sm:$0xff]
      %v196 = vld [vmem:[%s176 + $0x38] sm:$0xff]
      %v197 = vld [vmem:[%s176 + $0x40] sm:$0xff]
      %v198 = vld [vmem:[%s176 + $0x48] sm:$0xff]
      %v199 = vld [vmem:[%s176 + $0x50] sm:$0xff]
      %v200 = vld [vmem:[%s176 + $0x58] sm:$0xff]
      %v201 = vld [vmem:[%s176 + $0x60] sm:$0xff]
      %v202 = vld [vmem:[%s176 + $0x68] sm:$0xff]
      %v203 = vld [vmem:[%s176 + $0x70] sm:$0xff]
      %v204 = vld [vmem:[%s176 + $0x78] sm:$0xff]
      %v205 = vld [vmem:[%s176 + $0x80] sm:$0xff]
      %v206 = vld [vmem:[%s176 + $0x88] sm:$0xff]
      %v207 = vld [vmem:[%s176 + $0x90] sm:$0xff]
      %v208 = vld [vmem:[%s176 + $0x98] sm:$0xff]
      %v209 = vld [vmem:[%s176 + $0xa0] sm:$0xff]
      %v210 = vld [vmem:[%s176 + $0xa8] sm:$0xff]
      %v211 = vld [vmem:[%s176 + $0xb0] sm:$0xff]
      %v212 = vld [vmem:[%s176 + $0xb8] sm:$0xff]
      %v213 = vld [vmem:[%s176 + $0xc0] sm:$0xff]
      %v214 = vld [vmem:[%s176 + $0xc8] sm:$0xff]
      %v215 = vld [vmem:[%s176 + $0xd0] sm:$0xff]
      %v216 = vld [vmem:[%s176 + $0xd8] sm:$0xff]
      %v217 = vld [vmem:[%s176 + $0xe0] sm:$0xff]
      %v218 = vld [vmem:[%s176 + $0xe8] sm:$0xff]
      %v219 = vld [vmem:[%s176 + $0xf0] sm:$0xff]
      %v220 = vld [vmem:[%s176 + $0xf8] sm:$0xff]
      %v221 = vld [vmem:[%s1] sm:$0xf]
      %v222 = vld [vmem:[%s1 + $0x4] sm:$0xf]
      %v223 = vld [vmem:[%s1 + $0x8] sm:$0xf]
      %v224 = vld [vmem:[%s1 + $0xc] sm:$0xf]
      %v225 = vld [vmem:[%s1 + $0x10] sm:$0xf]
      %v226 = vld [vmem:[%s1 + $0x14] sm:$0xf]
      %v227 = vld [vmem:[%s1 + $0x18] sm:$0xf]
      %v228 = vld [vmem:[%s1 + $0x1c] sm:$0xf]
      %v229 = vld [vmem:[%s1 + $0x20] sm:$0xf]
      %v230 = vld [vmem:[%s1 + $0x24] sm:$0xf]
      %v231 = vld [vmem:[%s1 + $0x28] sm:$0xf]
      %v232 = vld [vmem:[%s1 + $0x2c] sm:$0xf]
      %v233 = vld [vmem:[%s1 + $0x30] sm:$0xf]
      %v234 = vld [vmem:[%s1 + $0x34] sm:$0xf]
      %v235 = vld [vmem:[%s1 + $0x38] sm:$0xf]
      %v236 = vld [vmem:[%s1 + $0x3c] sm:$0xf]
      %v237 = vld [vmem:[%s1 + $0x40] sm:$0xf]
      %v238 = vld [vmem:[%s1 + $0x44] sm:$0xf]
      %v239 = vld [vmem:[%s1 + $0x48] sm:$0xf]
      %v240 = vld [vmem:[%s1 + $0x4c] sm:$0xf]
      %v241 = vld [vmem:[%s1 + $0x50] sm:$0xf]
      %v242 = vld [vmem:[%s1 + $0x54] sm:$0xf]
      %v243 = vld [vmem:[%s1 + $0x58] sm:$0xf]
      %v244 = vld [vmem:[%s1 + $0x5c] sm:$0xf]
      %v245 = vld [vmem:[%s1 + $0x60] sm:$0xf]
      %v246 = vld [vmem:[%s1 + $0x64] sm:$0xf]
      %v247 = vld [vmem:[%s1 + $0x68] sm:$0xf]
      %v248 = vld [vmem:[%s1 + $0x6c] sm:$0xf]
      %v249 = vld [vmem:[%s1 + $0x70] sm:$0xf]
      %v250 = vld [vmem:[%s1 + $0x74] sm:$0xf]
      %v251 = vld [vmem:[%s1 + $0x78] sm:$0xf]
      %v252 = vld [vmem:[%s1 + $0x7c] sm:$0xf]
      %v285 = vunpack.c.l.b16 %v189
      %v286 = vunpack.c.h.b16 %v189
      %v287 = vunpack.c.l.b16 %v190
      %v288 = vunpack.c.h.b16 %v190
      %v289 = vunpack.c.l.b16 %v191
      %v290 = vunpack.c.h.b16 %v191
      %v291 = vunpack.c.l.b16 %v192
      %v292 = vunpack.c.h.b16 %v192
      %v293 = vunpack.c.l.b16 %v193
      %v294 = vunpack.c.h.b16 %v193
      %v295 = vunpack.c.l.b16 %v194
      %v296 = vunpack.c.h.b16 %v194
      %v297 = vunpack.c.l.b16 %v195
      %v298 = vunpack.c.h.b16 %v195
      %v299 = vunpack.c.l.b16 %v196
      %v300 = vunpack.c.h.b16 %v196
      %v301 = vunpack.c.l.b16 %v197
      %v302 = vunpack.c.h.b16 %v197
      %v303 = vunpack.c.l.b16 %v198
      %v304 = vunpack.c.h.b16 %v198
      %v305 = vunpack.c.l.b16 %v199
      %v306 = vunpack.c.h.b16 %v199
      %v307 = vunpack.c.l.b16 %v200
      %v308 = vunpack.c.h.b16 %v200
      %v309 = vunpack.c.l.b16 %v201
      %v310 = vunpack.c.h.b16 %v201
      %v311 = vunpack.c.l.b16 %v202
      %v312 = vunpack.c.h.b16 %v202
      %v313 = vunpack.c.l.b16 %v203
      %v314 = vunpack.c.h.b16 %v203
      %v315 = vunpack.c.l.b16 %v204
      %v316 = vunpack.c.h.b16 %v204
      %v317 = vunpack.c.l.b16 %v205
      %v318 = vunpack.c.h.b16 %v205
      %v319 = vunpack.c.l.b16 %v206
      %v320 = vunpack.c.h.b16 %v206
      %v321 = vunpack.c.l.b16 %v207
      %v322 = vunpack.c.h.b16 %v207
      %v323 = vunpack.c.l.b16 %v208
      %v324 = vunpack.c.h.b16 %v208
      %v325 = vunpack.c.l.b16 %v209
      %v326 = vunpack.c.h.b16 %v209
      %v327 = vunpack.c.l.b16 %v210
      %v328 = vunpack.c.h.b16 %v210
      %v329 = vunpack.c.l.b16 %v211
      %v330 = vunpack.c.h.b16 %v211
      %v331 = vunpack.c.l.b16 %v212
      %v332 = vunpack.c.h.b16 %v212
      %v333 = vunpack.c.l.b16 %v213
      %v334 = vunpack.c.h.b16 %v213
      %v335 = vunpack.c.l.b16 %v214
      %v336 = vunpack.c.h.b16 %v214
      %v337 = vunpack.c.l.b16 %v215
      %v338 = vunpack.c.h.b16 %v215
      %v339 = vunpack.c.l.b16 %v216
      %v340 = vunpack.c.h.b16 %v216
      %v341 = vunpack.c.l.b16 %v217
      %v342 = vunpack.c.h.b16 %v217
      %v343 = vunpack.c.l.b16 %v218
      %v344 = vunpack.c.h.b16 %v218
      %v345 = vunpack.c.l.b16 %v219
      %v346 = vunpack.c.h.b16 %v219
      %v347 = vunpack.c.l.b16 %v220
      %v348 = vunpack.c.h.b16 %v220
      %v349 = vpack.c.b16 %v287, %v285
      %v350 = vpack.c.b16 %v288, %v286
      %v351 = vpack.c.b16 %v291, %v289
      %v352 = vpack.c.b16 %v292, %v290
      %v353 = vpack.c.b16 %v295, %v293
      %v354 = vpack.c.b16 %v296, %v294
      %v355 = vpack.c.b16 %v299, %v297
      %v356 = vpack.c.b16 %v300, %v298
      %v357 = vpack.c.b16 %v303, %v301
      %v358 = vpack.c.b16 %v304, %v302
      %v359 = vpack.c.b16 %v307, %v305
      %v360 = vpack.c.b16 %v308, %v306
      %v361 = vpack.c.b16 %v311, %v309
      %v362 = vpack.c.b16 %v312, %v310
      %v363 = vpack.c.b16 %v315, %v313
      %v364 = vpack.c.b16 %v316, %v314
      %v365 = vpack.c.b16 %v319, %v317
      %v366 = vpack.c.b16 %v320, %v318
      %v367 = vpack.c.b16 %v323, %v321
      %v368 = vpack.c.b16 %v324, %v322
      %v369 = vpack.c.b16 %v327, %v325
      %v370 = vpack.c.b16 %v328, %v326
      %v371 = vpack.c.b16 %v331, %v329
      %v372 = vpack.c.b16 %v332, %v330
      %v373 = vpack.c.b16 %v335, %v333
      %v374 = vpack.c.b16 %v336, %v334
      %v375 = vpack.c.b16 %v339, %v337
      %v376 = vpack.c.b16 %v340, %v338
      %v377 = vpack.c.b16 %v343, %v341
      %v378 = vpack.c.b16 %v344, %v342
      %v379 = vpack.c.b16 %v347, %v345
      %v380 = vpack.c.b16 %v348, %v346
      %v445 = vunpack.c.l.b16 %v221
      %v446 = vunpack.c.l.b16 %v222
      %v447 = vunpack.c.l.b16 %v223
      %v448 = vunpack.c.l.b16 %v224
      %v449 = vunpack.c.l.b16 %v225
      %v450 = vunpack.c.l.b16 %v226
      %v451 = vunpack.c.l.b16 %v227
      %v452 = vunpack.c.l.b16 %v228
      %v453 = vunpack.c.l.b16 %v229
      %v454 = vunpack.c.l.b16 %v230
      %v455 = vunpack.c.l.b16 %v231
      %v456 = vunpack.c.l.b16 %v232
      %v457 = vunpack.c.l.b16 %v233
      %v458 = vunpack.c.l.b16 %v234
      %v459 = vunpack.c.l.b16 %v235
      %v460 = vunpack.c.l.b16 %v236
      %v461 = vunpack.c.l.b16 %v237
      %v462 = vunpack.c.l.b16 %v238
      %v463 = vunpack.c.l.b16 %v239
      %v464 = vunpack.c.l.b16 %v240
      %v465 = vunpack.c.l.b16 %v241
      %v466 = vunpack.c.l.b16 %v242
      %v467 = vunpack.c.l.b16 %v243
      %v468 = vunpack.c.l.b16 %v244
      %v469 = vunpack.c.l.b16 %v245
      %v470 = vunpack.c.l.b16 %v246
      %v471 = vunpack.c.l.b16 %v247
      %v472 = vunpack.c.l.b16 %v248
      %v473 = vunpack.c.l.b16 %v249
      %v474 = vunpack.c.l.b16 %v250
      %v475 = vunpack.c.l.b16 %v251
      %v476 = vunpack.c.l.b16 %v252
      %v477 = vpack.c.b16 %v446, %v445
      %v478 = vpack.c.b16 %v448, %v447
      %v479 = vpack.c.b16 %v450, %v449
      %v480 = vpack.c.b16 %v452, %v451
      %v481 = vpack.c.b16 %v454, %v453
      %v482 = vpack.c.b16 %v456, %v455
      %v483 = vpack.c.b16 %v458, %v457
      %v484 = vpack.c.b16 %v460, %v459
      %v485 = vpack.c.b16 %v462, %v461
      %v486 = vpack.c.b16 %v464, %v463
      %v487 = vpack.c.b16 %v466, %v465
      %v488 = vpack.c.b16 %v468, %v467
      %v489 = vpack.c.b16 %v470, %v469
      %v490 = vpack.c.b16 %v472, %v471
      %v491 = vpack.c.b16 %v474, %v473
      %v492 = vpack.c.b16 %v476, %v475
      %509 = vmatprep.subr.bf16.mxu0 0
      %510 = vmatpush1.bf16.msra.mxu0 %v484
      %511 = vmatprep.subr.bf16.mxu0 0
      %512 = vmatpush1.bf16.msra.mxu0 %v483
      %513 = vmatprep.subr.bf16.mxu0 0
      %514 = vmatpush1.bf16.msra.mxu0 %v482
      %515 = vmatprep.subr.bf16.mxu0 0
      %516 = vmatpush1.bf16.msra.mxu0 %v481
      %517 = vmatprep.subr.bf16.mxu0 0
      %518 = vmatpush1.bf16.msra.mxu0 %v480
      %519 = vmatprep.subr.bf16.mxu0 0
      %520 = vmatpush1.bf16.msra.mxu0 %v479
      %521 = vmatprep.subr.bf16.mxu0 0
      %522 = vmatpush1.bf16.msra.mxu0 %v478
      %523 = vmatprep.subr.bf16.mxu0 0
      %524 = vmatpush1.bf16.msra.mxu0 %v477
      %525 = vmatprep.subr.bf16.mxu0 0
      %526 = vmatpush2.bf16.msra.mxu0 %v492
      %527 = vmatprep.subr.bf16.mxu0 0
      %528 = vmatpush2.bf16.msra.mxu0 %v491
      %529 = vmatprep.subr.bf16.mxu0 0
      %530 = vmatpush2.bf16.msra.mxu0 %v490
      %531 = vmatprep.subr.bf16.mxu0 0
      %532 = vmatpush2.bf16.msra.mxu0 %v489
      %533 = vmatprep.subr.bf16.mxu0 0
      %534 = vmatpush2.bf16.msra.mxu0 %v488
      %535 = vmatprep.subr.bf16.mxu0 0
      %536 = vmatpush2.bf16.msra.mxu0 %v487
      %537 = vmatprep.subr.bf16.mxu0 0
      %538 = vmatpush2.bf16.msra.mxu0 %v486
      %539 = vmatprep.subr.bf16.mxu0 0
      %540 = vmatpush2.bf16.msra.mxu0 %v485
      %541 = vmatprep.mubr.bf16.mxu0 %v350
      %542 = vmatmul.mubr.bf16.gmra.mxu0 %v349
      %v543 = vpop.f32.mrf.mxu0
      %v544 = vadd.f32 0.0, %v543
      %v545 = vpop.f32.mrf.mxu0
      %v546 = vpop.f32.mrf.mxu0
      %v547 = vadd.f32 0.0, %v546
      %v548 = vpop.f32.mrf.mxu0
      %549 = vmatprep.mubr.bf16.mxu0 %v352
      %550 = vmatmul.mubr.bf16.gmra.mxu0 %v351
      %v551 = vpop.f32.mrf.mxu0
      %v552 = vadd.f32 0.0, %v551
      %v553 = vpop.f32.mrf.mxu0
      %v554 = vpop.f32.mrf.mxu0
      %v555 = vadd.f32 0.0, %v554
      %v556 = vpop.f32.mrf.mxu0
      %557 = vmatprep.mubr.bf16.mxu0 %v354
      %558 = vmatmul.mubr.bf16.gmra.mxu0 %v353
      %v559 = vpop.f32.mrf.mxu0
      %v560 = vadd.f32 0.0, %v559
      %v561 = vpop.f32.mrf.mxu0
      %v562 = vpop.f32.mrf.mxu0
      %v563 = vadd.f32 0.0, %v562
      %v564 = vpop.f32.mrf.mxu0
      %565 = vmatprep.mubr.bf16.mxu0 %v356
      %566 = vmatmul.mubr.bf16.gmra.mxu0 %v355
      %v567 = vpop.f32.mrf.mxu0
      %v568 = vadd.f32 0.0, %v567
      %v569 = vpop.f32.mrf.mxu0
      %v570 = vpop.f32.mrf.mxu0
      %v571 = vadd.f32 0.0, %v570
      %v572 = vpop.f32.mrf.mxu0
      %573 = vmatprep.mubr.bf16.mxu0 %v358
      %574 = vmatmul.mubr.bf16.gmra.mxu0 %v357
      %v575 = vpop.f32.mrf.mxu0
      %v576 = vadd.f32 0.0, %v575
      %v577 = vpop.f32.mrf.mxu0
      %v578 = vpop.f32.mrf.mxu0
      %v579 = vadd.f32 0.0, %v578
      %v580 = vpop.f32.mrf.mxu0
      %581 = vmatprep.mubr.bf16.mxu0 %v360
      %582 = vmatmul.mubr.bf16.gmra.mxu0 %v359
      %v583 = vpop.f32.mrf.mxu0
      %v584 = vadd.f32 0.0, %v583
      %v585 = vpop.f32.mrf.mxu0
      %v586 = vpop.f32.mrf.mxu0
      %v587 = vadd.f32 0.0, %v586
      %v588 = vpop.f32.mrf.mxu0
      %589 = vmatprep.mubr.bf16.mxu0 %v362
      %590 = vmatmul.mubr.bf16.gmra.mxu0 %v361
      %v591 = vpop.f32.mrf.mxu0
      %v592 = vadd.f32 0.0, %v591
      %v593 = vpop.f32.mrf.mxu0
      %v594 = vpop.f32.mrf.mxu0
      %v595 = vadd.f32 0.0, %v594
      %v596 = vpop.f32.mrf.mxu0
      %597 = vmatprep.mubr.bf16.mxu0 %v364
      %598 = vmatmul.mubr.bf16.gmra.mxu0 %v363
      %v599 = vpop.f32.mrf.mxu0
      %v600 = vadd.f32 0.0, %v599
      %v601 = vpop.f32.mrf.mxu0
      %v602 = vpop.f32.mrf.mxu0
      %v603 = vadd.f32 0.0, %v602
      %v604 = vpop.f32.mrf.mxu0
      %605 = vmatprep.mubr.bf16.mxu0 %v366
      %606 = vmatmul.mubr.bf16.gmra.mxu0 %v365
      %v607 = vpop.f32.mrf.mxu0
      %v608 = vadd.f32 0.0, %v607
      %v609 = vpop.f32.mrf.mxu0
      %v610 = vpop.f32.mrf.mxu0
      %v611 = vadd.f32 0.0, %v610
      %v612 = vpop.f32.mrf.mxu0
      %613 = vmatprep.mubr.bf16.mxu0 %v368
      %614 = vmatmul.mubr.bf16.gmra.mxu0 %v367
      %v615 = vpop.f32.mrf.mxu0
      %v616 = vadd.f32 0.0, %v615
      %v617 = vpop.f32.mrf.mxu0
      %v618 = vpop.f32.mrf.mxu0
      %v619 = vadd.f32 0.0, %v618
      %v620 = vpop.f32.mrf.mxu0
      %621 = vmatprep.mubr.bf16.mxu0 %v370
      %622 = vmatmul.mubr.bf16.gmra.mxu0 %v369
      %v623 = vpop.f32.mrf.mxu0
      %v624 = vadd.f32 0.0, %v623
      %v625 = vpop.f32.mrf.mxu0
      %v626 = vpop.f32.mrf.mxu0
      %v627 = vadd.f32 0.0, %v626
      %v628 = vpop.f32.mrf.mxu0
      %629 = vmatprep.mubr.bf16.mxu0 %v372
      %630 = vmatmul.mubr.bf16.gmra.mxu0 %v371
      %v631 = vpop.f32.mrf.mxu0
      %v632 = vadd.f32 0.0, %v631
      %v633 = vpop.f32.mrf.mxu0
      %v634 = vpop.f32.mrf.mxu0
      %v635 = vadd.f32 0.0, %v634
      %v636 = vpop.f32.mrf.mxu0
      %637 = vmatprep.mubr.bf16.mxu0 %v374
      %638 = vmatmul.mubr.bf16.gmra.mxu0 %v373
      %v639 = vpop.f32.mrf.mxu0
      %v640 = vadd.f32 0.0, %v639
      %v641 = vpop.f32.mrf.mxu0
      %v642 = vpop.f32.mrf.mxu0
      %v643 = vadd.f32 0.0, %v642
      %v644 = vpop.f32.mrf.mxu0
      %645 = vmatprep.mubr.bf16.mxu0 %v376
      %646 = vmatmul.mubr.bf16.gmra.mxu0 %v375
      %v647 = vpop.f32.mrf.mxu0
      %v648 = vadd.f32 0.0, %v647
      %v649 = vpop.f32.mrf.mxu0
      %v650 = vpop.f32.mrf.mxu0
      %v651 = vadd.f32 0.0, %v650
      %v652 = vpop.f32.mrf.mxu0
      %653 = vmatprep.mubr.bf16.mxu0 %v378
      %654 = vmatmul.mubr.bf16.gmra.mxu0 %v377
      %v655 = vpop.f32.mrf.mxu0
      %v656 = vadd.f32 0.0, %v655
      %v657 = vpop.f32.mrf.mxu0
      %v658 = vpop.f32.mrf.mxu0
      %v659 = vadd.f32 0.0, %v658
      %v660 = vpop.f32.mrf.mxu0
      %661 = vmatprep.mubr.bf16.mxu0 %v380
      %662 = vmatmul.mubr.bf16.gmra.mxu0 %v379
      %v663 = vpop.f32.mrf.mxu0
      %v664 = vadd.f32 0.0, %v663
      %v665 = vpop.f32.mrf.mxu0
      %v666 = vpop.f32.mrf.mxu0
      %v667 = vadd.f32 0.0, %v666
      %v668 = vpop.f32.mrf.mxu0
      %669 = vdwg.mxu0
      %670 = vst [vmem:[%s182] sm:$0xff] %v544
      %671 = vst [vmem:[%s182 + $0x8] sm:$0xff] %v547
      %672 = vst [vmem:[%s182 + $0x10] sm:$0xff] %v552
      %673 = vst [vmem:[%s182 + $0x18] sm:$0xff] %v555
      %674 = vst [vmem:[%s182 + $0x20] sm:$0xff] %v560
      %675 = vst [vmem:[%s182 + $0x28] sm:$0xff] %v563
      %676 = vst [vmem:[%s182 + $0x30] sm:$0xff] %v568
      %677 = vst [vmem:[%s182 + $0x38] sm:$0xff] %v571
      %678 = vst [vmem:[%s182 + $0x40] sm:$0xff] %v576
      %679 = vst [vmem:[%s182 + $0x48] sm:$0xff] %v579
      %680 = vst [vmem:[%s182 + $0x50] sm:$0xff] %v584
      %681 = vst [vmem:[%s182 + $0x58] sm:$0xff] %v587
      %682 = vst [vmem:[%s182 + $0x60] sm:$0xff] %v592
      %683 = vst [vmem:[%s182 + $0x68] sm:$0xff] %v595
      %684 = vst [vmem:[%s182 + $0x70] sm:$0xff] %v600
      %685 = vst [vmem:[%s182 + $0x78] sm:$0xff] %v603
      %686 = vst [vmem:[%s182 + $0x80] sm:$0xff] %v608
      %687 = vst [vmem:[%s182 + $0x88] sm:$0xff] %v611
      %688 = vst [vmem:[%s182 + $0x90] sm:$0xff] %v616
      %689 = vst [vmem:[%s182 + $0x98] sm:$0xff] %v619
      %690 = vst [vmem:[%s182 + $0xa0] sm:$0xff] %v624
      %691 = vst [vmem:[%s182 + $0xa8] sm:$0xff] %v627
      %692 = vst [vmem:[%s182 + $0xb0] sm:$0xff] %v632
      %693 = vst [vmem:[%s182 + $0xb8] sm:$0xff] %v635
      %694 = vst [vmem:[%s182 + $0xc0] sm:$0xff] %v640
      %695 = vst [vmem:[%s182 + $0xc8] sm:$0xff] %v643
      %696 = vst [vmem:[%s182 + $0xd0] sm:$0xff] %v648
      %697 = vst [vmem:[%s182 + $0xd8] sm:$0xff] %v651
      %698 = vst [vmem:[%s182 + $0xe0] sm:$0xff] %v656
      %699 = vst [vmem:[%s182 + $0xe8] sm:$0xff] %v659
      %700 = vst [vmem:[%s182 + $0xf0] sm:$0xff] %v664
      %701 = vst [vmem:[%s182 + $0xf8] sm:$0xff] %v667
      %v702 = vadd.f32 %v544, %v547
      %v703 = vadd.f32 %v702, %v552
      %v704 = vadd.f32 %v703, %v555
      %v705 = vadd.f32 %v704, %v560
      %v706 = vadd.f32 %v705, %v563
      %v707 = vadd.f32 %v706, %v568
      %v708 = vadd.f32 %v707, %v571
      %v709 = vadd.f32 %v708, %v576
      %v710 = vadd.f32 %v709, %v579
      %v711 = vadd.f32 %v710, %v584
      %v712 = vadd.f32 %v711, %v587
      %v713 = vadd.f32 %v712, %v592
      %v714 = vadd.f32 %v713, %v595
      %v715 = vadd.f32 %v714, %v600
      %v716 = vadd.f32 %v715, %v603
      %v717 = vadd.f32 %v716, %v608
      %v718 = vadd.f32 %v717, %v611
      %v719 = vadd.f32 %v718, %v616
      %v720 = vadd.f32 %v719, %v619
      %v721 = vadd.f32 %v720, %v624
      %v722 = vadd.f32 %v721, %v627
      %v723 = vadd.f32 %v722, %v632
      %v724 = vadd.f32 %v723, %v635
      %v725 = vadd.f32 %v724, %v640
      %v726 = vadd.f32 %v725, %v643
      %v727 = vadd.f32 %v726, %v648
      %v728 = vadd.f32 %v727, %v651
      %v729 = vadd.f32 %v728, %v656
      %v730 = vadd.f32 %v729, %v659
      %v731 = vadd.f32 %v730, %v664
      %v732 = vadd.f32 %v731, %v667
      %v733 = vrot.slane %v732, 4
      %v734 = vadd.f32 %v732, %v733
      %v735 = vrot.slane %v734, 2
      %v736 = vadd.f32 %v734, %v735
      %v737 = vrot.slane %v736, 1
      %v738 = vadd.f32 %v736, %v737
      %v739 = vmul.f32 %v544, %v544
      %v740 = vmul.f32 %v547, %v547
      %v741 = vmul.f32 %v552, %v552
      %v742 = vmul.f32 %v555, %v555
      %v743 = vmul.f32 %v560, %v560
      %v744 = vmul.f32 %v563, %v563
      %v745 = vmul.f32 %v568, %v568
      %v746 = vmul.f32 %v571, %v571
      %v747 = vmul.f32 %v576, %v576
      %v748 = vmul.f32 %v579, %v579
      %v749 = vmul.f32 %v584, %v584
      %v750 = vmul.f32 %v587, %v587
      %v751 = vmul.f32 %v592, %v592
      %v752 = vmul.f32 %v595, %v595
      %v753 = vmul.f32 %v600, %v600
      %v754 = vmul.f32 %v603, %v603
      %v755 = vmul.f32 %v608, %v608
      %v756 = vmul.f32 %v611, %v611
      %v757 = vmul.f32 %v616, %v616
      %v758 = vmul.f32 %v619, %v619
      %v759 = vmul.f32 %v624, %v624
      %v760 = vmul.f32 %v627, %v627
      %v761 = vmul.f32 %v632, %v632
      %v762 = vmul.f32 %v635, %v635
      %v763 = vmul.f32 %v640, %v640
      %v764 = vmul.f32 %v643, %v643
      %v765 = vmul.f32 %v648, %v648
      %v766 = vmul.f32 %v651, %v651
      %v767 = vmul.f32 %v656, %v656
      %v768 = vmul.f32 %v659, %v659
      %v769 = vmul.f32 %v664, %v664
      %v770 = vmul.f32 %v667, %v667
      %v771 = vadd.f32 %v739, %v740
      %v772 = vadd.f32 %v771, %v741
      %v773 = vadd.f32 %v772, %v742
      %v774 = vadd.f32 %v773, %v743
      %v775 = vadd.f32 %v774, %v744
      %v776 = vadd.f32 %v775, %v745
      %v777 = vadd.f32 %v776, %v746
      %v778 = vadd.f32 %v777, %v747
      %v779 = vadd.f32 %v778, %v748
      %v780 = vadd.f32 %v779, %v749
      %v781 = vadd.f32 %v780, %v750
      %v782 = vadd.f32 %v781, %v751
      %v783 = vadd.f32 %v782, %v752
      %v784 = vadd.f32 %v783, %v753
      %v785 = vadd.f32 %v784, %v754
      %v786 = vadd.f32 %v785, %v755
      %v787 = vadd.f32 %v786, %v756
      %v788 = vadd.f32 %v787, %v757
      %v789 = vadd.f32 %v788, %v758
      %v790 = vadd.f32 %v789, %v759
      %v791 = vadd.f32 %v790, %v760
      %v792 = vadd.f32 %v791, %v761
      %v793 = vadd.f32 %v792, %v762
      %v794 = vadd.f32 %v793, %v763
      %v795 = vadd.f32 %v794, %v764
      %v796 = vadd.f32 %v795, %v765
      %v797 = vadd.f32 %v796, %v766
      %v798 = vadd.f32 %v797, %v767
      %v799 = vadd.f32 %v798, %v768
      %v800 = vadd.f32 %v799, %v769
      %v801 = vadd.f32 %v800, %v770
      %v802 = vrot.slane %v801, 4
      %v803 = vadd.f32 %v801, %v802
      %v804 = vrot.slane %v803, 2
      %v805 = vadd.f32 %v803, %v804
      %v806 = vrot.slane %v805, 1
      %v807 = vadd.f32 %v805, %v806
      %808 = vst [vmem:[%s187] sm:$0x1] %v738
      %809 = vst [vmem:[%s187 + $0x1] sm:$0x1] %v807
      %s810 = smul.u32 32, %s15
      %p811 = scmp.lt.s32.totalorder %s810, 63
      %s812 = scalar_select %p811, %s810, 63
      %s813 = smul.addr %s812, 8
      %s814 = scalar_lea.vmem %s2, %s813
      %p815 = scmp.lt.s32.totalorder %s15, 1
      %s816 = scalar_select %p815, %s15, 1
      %s817 = smul.addr %s816, 2
      %s818 = scalar_lea.vmem %s3, %s817
      // Predicated region
      $region29: #{frontend3d_pallas.2} parent=27 // pred_check
        %p819 = pneg %p80
      $region30: #{frontend3d_pallas.2} parent=27 // pred_check_branch
        %821 = sbr.rel (%p819) target = $region32
      $region31: #{frontend3d_pallas.2} parent=27 // pred_region
        %s822 = smul.u32 32, %s15
      $region32: #{frontend3d_pallas.2} parent=27 // pred_fallthru
        _
      // Predicated region
      $region33: #{frontend3d_pallas.2} parent=27 // pred_check
        %p823 = pneg %p106
      $region34: #{frontend3d_pallas.2} parent=27 // pred_check_branch
        %825 = sbr.rel (%p823) target = $region36
      $region35: #{frontend3d_pallas.2} parent=27 // pred_region
        _
      $region36: #{frontend3d_pallas.2} parent=27 // pred_fallthru
        _
    $region28: #{frontend3d_pallas.2} parent=5 // pred_fallthru
      _
    %p826 = scmp.le.s32.totalorder 2, %s10
    // Predicated region
    $region37: #{frontend3d_pallas.2} parent=5 // pred_check
      %p827 = pneg %p826
    $region38: #{frontend3d_pallas.2} parent=5 // pred_check_branch
      %829 = sbr.rel (%p827) target = $region40
    $region39: #{frontend3d_pallas.2} parent=5 // pred_region
      %s830 = ssub.s32 %s10, 2
      // Predicated region
      $region41: #{frontend3d_pallas.2} parent=39 // pred_check
        %p831 = pneg %p86
      $region42: #{frontend3d_pallas.2} parent=39 // pred_check_branch
        %833 = sbr.rel (%p831) target = $region44
      $region43: #{frontend3d_pallas.2} parent=39 // pred_region
        %s834 = smul.u32 32, %s16
        %p835 = scmp.lt.s32.totalorder %s834, 63
        %s836 = scalar_select %p835, %s834, 63
        %s837 = smul.addr %s836, 8
        %s838 = scalar_lea.vmem %s2, %s837
      $region44: #{frontend3d_pallas.2} parent=39 // pred_fallthru
        _
      // Predicated region
      $region45: #{frontend3d_pallas.2} parent=39 // pred_check
        %p839 = pneg %p112
      $region46: #{frontend3d_pallas.2} parent=39 // pred_check_branch
        %841 = sbr.rel (%p839) target = $region48
      $region47: #{frontend3d_pallas.2} parent=39 // pred_region
        %p842 = scmp.lt.s32.totalorder %s16, 1
        %s843 = scalar_select %p842, %s16, 1
        %s844 = smul.addr %s843, 2
        %s845 = scalar_lea.vmem %s3, %s844
      $region48: #{frontend3d_pallas.2} parent=39 // pred_fallthru
        _
    $region40: #{frontend3d_pallas.2} parent=5 // pred_fallthru
      _
  $region6: #{frontend3d_pallas.2} parent=0 // loop_footer
    %s14 = sadd.s32 1, %s10
  $region7: #{frontend3d_pallas.2} parent=0 // loop_footer_branch
    %9 = sbr.rel target = $region3
  $region8: #{frontend3d_pallas.2} parent=0 // loop_exit
    _

</llo_original>
